<compile_context>
chip_gen: v6e
topology: v6e:2x2x1
jax: 0.10.0
libtpu: 0.0.40
codegen_flags: <defaults>
</compile_context>

<pallas_src>
import functools

import jax
import jax.numpy as jnp
from jax import lax
from jax.experimental import pallas as pl
from jax.experimental.pallas import tpu as pltpu

EPS = 1e-5


def _round_up(x, m):
    return (x + m - 1) // m * m


# ----------------------------------------------------------------------------------
# Kernel.  Two x layouts:
#   streamed_x=True : x tile is (TM, F) f32 in natural layout; input-BN affine, bf16
#                     cast and the batch->lanes swizzle happen here (preferred path).
#   streamed_x=False: x tile is (F, TM) bf16, pre-transposed on the host (fallback).
# In both cases the intermediates are (H, TM) with batch on the 128-lane axis, so the
# final (1, TM) sigmoid row is lane-dense (unmasked stores).
# ----------------------------------------------------------------------------------
def mlp_kernel(x_ref, bn0_ref, w1_ref, w2_ref, w3_ref, pk_ref, o_ref, *, streamed_x):
    H = w2_ref.shape[0]
    b1 = pk_ref[0 * H:1 * H, :]          # (H, 1) f32
    b2 = pk_ref[1 * H:2 * H, :]
    b3 = pk_ref[2 * H:3 * H, :]
    wo = pk_ref[3 * H:4 * H, :]          # output weight as a column (H, 1)
    bo = pk_ref[4 * H:4 * H + 1, :]      # output bias (1, 1)

    if streamed_x:
        # Input BatchNorm as an f32 affine on the raw (TM, F) tile, THEN the bf16 cast
        # (raw features keep full precision until normalized).
        xn = x_ref[...] * bn0_ref[0:1, :] + bn0_ref[1:2, :]        # (TM, F) f32
        # Layer 1: W1 (H,F) contracted with x (TM,F) on F ("NT" matmul) -> (H, TM).
        h = lax.dot_general(w1_ref[...], xn.astype(jnp.bfloat16),
                            (((1,), (1,)), ((), ())),
                            preferred_element_type=jnp.float32)
    else:
        # Fallback: x already bf16 and (F, TM); input BN was applied on the host in f32.
        h = jnp.dot(w1_ref[...], x_ref[...], preferred_element_type=jnp.float32)

    # f32 bias + ReLU epilogue (portable to v5e), bf16 operands into each MXU matmul.
    h = jnp.maximum(h + b1, 0.0)
    h = jnp.dot(w2_ref[...], h.astype(jnp.bfloat16), preferred_element_type=jnp.float32)
    h = jnp.maximum(h + b2, 0.0)
    h = jnp.dot(w3_ref[...], h.astype(jnp.bfloat16), preferred_element_type=jnp.float32)
    h = jnp.maximum(h + b3, 0.0)

    # Output layer hidden -> 1 as VPU multiply + sublane (XLU) reduction rather than a
    # width-1 matmul; result is a lane-dense (1, TM) row.
    logit = jnp.sum(h * wo, axis=0, keepdims=True) + bo            # (1, TM)
    o_ref[...] = jax.nn.sigmoid(logit)


# ----------------------------------------------------------------------------------
# Host-side parameter preparation.  Eval-mode BN is y = x*s + t with
# s = gamma * rsqrt(var + eps).  Post-Linear BNs fold into the Linear weights/biases;
# the input BN is returned as (s0, t0) and applied to x in f32 inside the kernel.
# Params use PyTorch layout: Linear w (out, in), b (out,), BN vectors (feat,).
# ----------------------------------------------------------------------------------
def fold_params(params, eps=EPS):
    def affine(g, b, m, v):
        s = g * jax.lax.rsqrt(v + eps)
        return s, b - m * s

    s0, t0 = affine(params["g0"], params["be0"], params["m0"], params["v0"])
    s1, t1 = affine(params["g1"], params["be1"], params["m1"], params["v1"])
    s2, t2 = affine(params["g2"], params["be2"], params["m2"], params["v2"])
    s3, t3 = affine(params["g3"], params["be3"], params["m3"], params["v3"])

    w1, b1 = params["w1"], params["b1"]
    w2, b2 = params["w2"], params["b2"]
    w3, b3 = params["w3"], params["b3"]
    wo, bo = params["wout"], params["bout"]

    w1f = s1[:, None] * w1
    b1f = s1 * b1 + t1
    w2f = s2[:, None] * w2
    b2f = s2 * b2 + t2
    w3f = s3[:, None] * w3
    b3f = s3 * b3 + t3
    wof = wo                                                    # (1, H)

    H = w1.shape[0]
    Hp = _round_up(H, 8)
    if Hp != H:
        # Zero-pad hidden width to a sublane multiple: padded units are exactly 0 after
        # bias+ReLU and contribute 0 to every downstream dot product.
        dh = Hp - H
        w1f = jnp.pad(w1f, ((0, dh), (0, 0)))
        w2f = jnp.pad(w2f, ((0, dh), (0, dh)))
        w3f = jnp.pad(w3f, ((0, dh), (0, dh)))
        b1f = jnp.pad(b1f, ((0, dh),))
        b2f = jnp.pad(b2f, ((0, dh),))
        b3f = jnp.pad(b3f, ((0, dh),))
        wof = jnp.pad(wof, ((0, 0), (0, dh)))

    bn0 = jnp.stack([s0, t0], axis=0).astype(jnp.float32)       # (2, F)
    packed = jnp.concatenate(
        [b1f[:, None], b2f[:, None], b3f[:, None],
         wof.reshape(Hp, 1), bo.reshape(1, 1)], axis=0).astype(jnp.float32)

    return (bn0, w1f.astype(jnp.bfloat16), w2f.astype(jnp.bfloat16),
            w3f.astype(jnp.bfloat16), packed)


def _pallas_forward(x_arg, bn0, w1f, w2f, w3f, packed, *, F, Hp, TM, grid, streamed):
    if streamed:
        x_spec = pl.BlockSpec((TM, F), lambda i: (i, 0))   # natural (B, F) f32 layout
    else:
        x_spec = pl.BlockSpec((F, TM), lambda i: (0, i))   # pre-transposed bf16 layout

    return pl.pallas_call(
        functools.partial(mlp_kernel, streamed_x=streamed),
        # Output padded to grid*TM so every output block store is full and lane-dense;
        # the valid prefix is sliced off by the caller.
        out_shape=jax.ShapeDtypeStruct((1, grid * TM), jnp.float32),
        grid_spec=pltpu.PrefetchScalarGridSpec(
            num_scalar_prefetch=0,
            grid=(grid,),
            in_specs=[
                x_spec,
                # Constant-index params: DMA'd once, VMEM-resident across the grid
                # (default double-buffering of these few-KiB blocks is negligible).
                pl.BlockSpec((2, F), lambda i: (0, 0)),
                pl.BlockSpec((Hp, F), lambda i: (0, 0)),
                pl.BlockSpec((Hp, Hp), lambda i: (0, 0)),
                pl.BlockSpec((Hp, Hp), lambda i: (0, 0)),
                pl.BlockSpec((4 * Hp + 1, 1), lambda i: (0, 0)),
            ],
            out_specs=pl.BlockSpec((1, TM), lambda i: (0, i)),
        ),
        compiler_params=pltpu.CompilerParams(
            dimension_semantics=("parallel",),
            # VMEM at TM=8192, F=H=32: double-buffered x 2*TM*F*4 = 2 MiB, (Hp,TM)
            # f32/bf16 intermediates ~3 MiB, weights/biases/output < 0.5 MiB  => ~6 MiB,
            # comfortably inside 32 MiB and inside v7x's 64 MiB physical VMEM.
            vmem_limit_bytes=32 * 1024 * 1024,
        ),
    )(x_arg, bn0, w1f, w2f, w3f, packed)


def improved_nn_forward(x, params, *, block_b=8192):
    """x: (B, input_size) float32. Returns (B, 1) float32 eval-mode forward."""
    x = x.astype(jnp.float32)
    B, F = x.shape
    bn0, w1f, w2f, w3f, packed = fold_params(params)
    Hp = w1f.shape[0]

    # Batch tile: large (amortizes per-grid-step overhead), 128-lane aligned, and capped
    # so the grid has >= 2 steps whenever B allows (v7x shards the "parallel" batch axis
    # across both TensorCores; no effect on single-TC v5e/v6e).
    B128 = _round_up(B, 128)
    TM = min(_round_up(block_b, 128), B128)
    if B128 >= 2 * 128:
        TM = min(TM, _round_up(pl.cdiv(B128, 2), 128))
    grid = pl.cdiv(B, TM)

    common = dict(F=F, Hp=Hp, TM=TM, grid=grid)
    try:
        out = _pallas_forward(x, bn0, w1f, w2f, w3f, packed, streamed=True, **common)
        out = jax.block_until_ready(out)
    except Exception:
        # TODO(synk): remove once the NT (transposed-rhs) first matmul is validated on all
        # target chips.  Fallback = v2's pre-transposed-x layout with one fused host pass
        # over x (f32 input-BN affine + bf16 cast + transpose + pad).
        s0 = bn0[0][None, :]
        t0 = bn0[1][None, :]
        x_t = jnp.pad((x * s0 + t0).astype(jnp.bfloat16).T,
                      ((0, 0), (0, grid * TM - B)))
        out = _pallas_forward(x_t, bn0, w1f, w2f, w3f, packed, streamed=False, **common)

    return out[0, :B].reshape(B, 1)


# ----------------------------------------------------------------------------------
# Deterministic parameter init (PyTorch layout) and a pure-JAX f32 reference.
# ----------------------------------------------------------------------------------
def init_params(key, input_size, hidden_size):
    ks = jax.random.split(key, 8)
    p = {}

    def lin(k, fan_in, fan_out):
        bound = float(fan_in) ** -0.5
        kw, kb = jax.random.split(k)
        w = jax.random.uniform(kw, (fan_out, fan_in), jnp.float32, -bound, bound)
        b = jax.random.uniform(kb, (fan_out,), jnp.float32, -bound, bound)
        return w, b

    def bn(k, f):
        k1, k2, k3, k4 = jax.random.split(k, 4)
        g = jax.random.uniform(k1, (f,), jnp.float32, 0.8, 1.2)
        be = 0.3 * jax.random.normal(k2, (f,), jnp.float32)
        m = 0.3 * jax.random.normal(k3, (f,), jnp.float32)
        v = jax.random.uniform(k4, (f,), jnp.float32, 0.8, 1.2)
        return g, be, m, v

    p["g0"], p["be0"], p["m0"], p["v0"] = bn(ks[0], input_size)
    p["w1"], p["b1"] = lin(ks[1], input_size, hidden_size)
    p["g1"], p["be1"], p["m1"], p["v1"] = bn(ks[2], hidden_size)
    p["w2"], p["b2"] = lin(ks[3], hidden_size, hidden_size)
    p["g2"], p["be2"], p["m2"], p["v2"] = bn(ks[4], hidden_size)
    p["w3"], p["b3"] = lin(ks[5], hidden_size, hidden_size)
    p["g3"], p["be3"], p["m3"], p["v3"] = bn(ks[6], hidden_size)
    p["wout"], p["bout"] = lin(ks[7], hidden_size, 1)
    return p


def reference_forward(x, p, eps=EPS):
    def bn(h, g, be, m, v):
        return (h - m) * jax.lax.rsqrt(v + eps) * g + be

    h = bn(x, p["g0"], p["be0"], p["m0"], p["v0"])
    for i in ("1", "2", "3"):
        h = h @ p["w" + i].T + p["b" + i]
        h = bn(h, p["g" + i], p["be" + i], p["m" + i], p["v" + i])
        h = jnp.maximum(h, 0.0)
    return jax.nn.sigmoid(h @ p["wout"].T + p["bout"])


if __name__ == "__main__":
    B, INPUT_SIZE, HIDDEN_SIZE = 8, 32, 32

    key = jax.random.PRNGKey(0)
    kx, kp = jax.random.split(key)
    x = jax.random.normal(kx, (B, INPUT_SIZE), jnp.float32)
    params = init_params(kp, INPUT_SIZE, HIDDEN_SIZE)

    out = improved_nn_forward(x, params)
    out = jax.block_until_ready(out)

    ref = reference_forward(x, params)
    assert out.shape == (B, 1)
    # Tolerance reflects bf16 MXU matmuls; tightened from 5e-2 (v2) since the input BN
    # now runs in f32 before any bf16 cast.
    assert jnp.allclose(out, ref, atol=2e-2, rtol=0.0)

    print("KERNEL_OK")
</pallas_src>

<mosaic_0001>
module attributes {stable_mosaic.version = 11 : i64} {
  func.func @mlp_kernel(%arg0: i32, %arg1: memref<128x32xf32, #tpu.memory_space<vmem>>, %arg2: memref<2x32xf32, #tpu.memory_space<vmem>>, %arg3: memref<32x32xbf16, #tpu.memory_space<vmem>>, %arg4: memref<32x32xbf16, #tpu.memory_space<vmem>>, %arg5: memref<32x32xbf16, #tpu.memory_space<vmem>>, %arg6: memref<129x1xf32, #tpu.memory_space<vmem>>, %arg7: memref<1x128xf32, #tpu.memory_space<vmem>>) attributes {dimension_semantics = [#tpu.dimension_semantics<parallel>], iteration_bounds = array<i64: 1>, scalar_prefetch = 0 : i64, scratch_operands = 0 : i64, tpu.core_type = #tpu.core_type<tc>, window_params = [{transform_indices = @transform_0, window_bounds = array<i64: 128, 32>}, {pipeline_mode = #tpu.pipeline_mode<synchronous>, transform_indices = @transform_1, window_bounds = array<i64: 2, 32>}, {pipeline_mode = #tpu.pipeline_mode<synchronous>, transform_indices = @transform_2, window_bounds = array<i64: 32, 32>}, {pipeline_mode = #tpu.pipeline_mode<synchronous>, transform_indices = @transform_3, window_bounds = array<i64: 32, 32>}, {pipeline_mode = #tpu.pipeline_mode<synchronous>, transform_indices = @transform_4, window_bounds = array<i64: 32, 32>}, {pipeline_mode = #tpu.pipeline_mode<synchronous>, transform_indices = @transform_5, window_bounds = array<i64: 129, 1>}, {transform_indices = @transform_6, window_bounds = array<i64: 1, 128>}]} {
    %c0 = arith.constant 0 : index
    %c0_0 = arith.constant 0 : index
    %0 = vector.load %arg6[%c0, %c0_0] : memref<129x1xf32, #tpu.memory_space<vmem>>, vector<32x1xf32>
    %c32 = arith.constant 32 : index
    %c0_1 = arith.constant 0 : index
    %1 = vector.load %arg6[%c32, %c0_1] : memref<129x1xf32, #tpu.memory_space<vmem>>, vector<32x1xf32>
    %c64 = arith.constant 64 : index
    %c0_2 = arith.constant 0 : index
    %2 = vector.load %arg6[%c64, %c0_2] : memref<129x1xf32, #tpu.memory_space<vmem>>, vector<32x1xf32>
    %c96 = arith.constant 96 : index
    %c0_3 = arith.constant 0 : index
    %3 = vector.load %arg6[%c96, %c0_3] : memref<129x1xf32, #tpu.memory_space<vmem>>, vector<32x1xf32>
    %c128 = arith.constant 128 : index
    %c0_4 = arith.constant 0 : index
    %4 = vector.load %arg6[%c128, %c0_4] : memref<129x1xf32, #tpu.memory_space<vmem>>, vector<1x1xf32>
    %c0_5 = arith.constant 0 : index
    %c0_6 = arith.constant 0 : index
    %5 = vector.load %arg1[%c0_5, %c0_6] : memref<128x32xf32, #tpu.memory_space<vmem>>, vector<128x32xf32>
    %c0_7 = arith.constant 0 : index
    %c0_8 = arith.constant 0 : index
    %6 = vector.load %arg2[%c0_7, %c0_8] : memref<2x32xf32, #tpu.memory_space<vmem>>, vector<1x32xf32>
    %7 = vector.broadcast %6 : vector<1x32xf32> to vector<128x32xf32>
    %8 = arith.mulf %5, %7 : vector<128x32xf32>
    %c1 = arith.constant 1 : index
    %c0_9 = arith.constant 0 : index
    %9 = vector.load %arg2[%c1, %c0_9] : memref<2x32xf32, #tpu.memory_space<vmem>>, vector<1x32xf32>
    %10 = vector.broadcast %9 : vector<1x32xf32> to vector<128x32xf32>
    %11 = arith.addf %8, %10 : vector<128x32xf32>
    %c0_10 = arith.constant 0 : index
    %c0_11 = arith.constant 0 : index
    %12 = vector.load %arg3[%c0_10, %c0_11] : memref<32x32xbf16, #tpu.memory_space<vmem>>, vector<32x32xbf16>
    %13 = arith.truncf %11 : vector<128x32xf32> to vector<128x32xbf16>
    %cst = arith.constant dense<0.000000e+00> : vector<32x128xf32>
    %14 = tpu.matmul %12, %13, %cst {dimension_numbers = #tpu.dot_dimension_numbers<[1], [1], [0], [0], [0, 0, 1, 0], [], []>} : vector<32x32xbf16>, vector<128x32xbf16>, vector<32x128xf32> -> vector<32x128xf32>
    %15 = vector.broadcast %0 : vector<32x1xf32> to vector<32x128xf32>
    %16 = arith.addf %14, %15 : vector<32x128xf32>
    %cst_12 = arith.constant 0.000000e+00 : f32
    %17 = vector.broadcast %cst_12 : f32 to vector<32x128xf32>
    %18 = arith.maximumf %16, %17 : vector<32x128xf32>
    %c0_13 = arith.constant 0 : index
    %c0_14 = arith.constant 0 : index
    %19 = vector.load %arg4[%c0_13, %c0_14] : memref<32x32xbf16, #tpu.memory_space<vmem>>, vector<32x32xbf16>
    %20 = arith.truncf %18 : vector<32x128xf32> to vector<32x128xbf16>
    %cst_15 = arith.constant dense<0.000000e+00> : vector<32x128xf32>
    %21 = tpu.matmul %19, %20, %cst_15 {dimension_numbers = #tpu.dot_dimension_numbers<[1], [0], [0], [1], [0, 0, 1, 1], [], []>} : vector<32x32xbf16>, vector<32x128xbf16>, vector<32x128xf32> -> vector<32x128xf32>
    %22 = vector.broadcast %1 : vector<32x1xf32> to vector<32x128xf32>
    %23 = arith.addf %21, %22 : vector<32x128xf32>
    %cst_16 = arith.constant 0.000000e+00 : f32
    %24 = vector.broadcast %cst_16 : f32 to vector<32x128xf32>
    %25 = arith.maximumf %23, %24 : vector<32x128xf32>
    %c0_17 = arith.constant 0 : index
    %c0_18 = arith.constant 0 : index
    %26 = vector.load %arg5[%c0_17, %c0_18] : memref<32x32xbf16, #tpu.memory_space<vmem>>, vector<32x32xbf16>
    %27 = arith.truncf %25 : vector<32x128xf32> to vector<32x128xbf16>
    %cst_19 = arith.constant dense<0.000000e+00> : vector<32x128xf32>
    %28 = tpu.matmul %26, %27, %cst_19 {dimension_numbers = #tpu.dot_dimension_numbers<[1], [0], [0], [1], [0, 0, 1, 1], [], []>} : vector<32x32xbf16>, vector<32x128xbf16>, vector<32x128xf32> -> vector<32x128xf32>
    %29 = vector.broadcast %2 : vector<32x1xf32> to vector<32x128xf32>
    %30 = arith.addf %28, %29 : vector<32x128xf32>
    %cst_20 = arith.constant 0.000000e+00 : f32
    %31 = vector.broadcast %cst_20 : f32 to vector<32x128xf32>
    %32 = arith.maximumf %30, %31 : vector<32x128xf32>
    %33 = vector.broadcast %3 : vector<32x1xf32> to vector<32x128xf32>
    %34 = arith.mulf %32, %33 : vector<32x128xf32>
    %cst_21 = arith.constant dense<0.000000e+00> : vector<128xf32>
    %35 = vector.multi_reduction <add>, %34, %cst_21 [0] : vector<32x128xf32> to vector<128xf32>
    %36 = vector.shape_cast %35 : vector<128xf32> to vector<1x128xf32>
    %37 = vector.broadcast %4 : vector<1x1xf32> to vector<1x128xf32>
    %38 = arith.addf %36, %37 : vector<1x128xf32>
    %39 = arith.negf %38 : vector<1x128xf32>
    %40 = math.exp %39 : vector<1x128xf32>
    %cst_22 = arith.constant 1.000000e+00 : f32
    %41 = vector.broadcast %cst_22 : f32 to vector<1x128xf32>
    %42 = arith.addf %41, %40 : vector<1x128xf32>
    %43 = arith.divf %41, %42 : vector<1x128xf32>
    %c0_23 = arith.constant 0 : index
    %c0_24 = arith.constant 0 : index
    %44 = vector.load %arg7[%c0_23, %c0_24] : memref<1x128xf32, #tpu.memory_space<vmem>>, vector<1x128xf32>
    tpu.vector_store %arg7[%c0_23, %c0_24], %43 {strides = array<i32>} : memref<1x128xf32, #tpu.memory_space<vmem>>, vector<1x128xf32>,
    return
  }
  func.func @transform_0(%arg0: i32) -> (i32, i32) {
    %c0_i32 = arith.constant 0 : i32
    %c0_i32_0 = arith.constant 0 : i32
    return %arg0, %c0_i32 : i32, i32
  }
  func.func @transform_1(%arg0: i32) -> (i32, i32) {
    %c0_i32 = arith.constant 0 : i32
    %c0_i32_0 = arith.constant 0 : i32
    %c0_i32_1 = arith.constant 0 : i32
    return %c0_i32, %c0_i32_0 : i32, i32
  }
  func.func @transform_2(%arg0: i32) -> (i32, i32) {
    %c0_i32 = arith.constant 0 : i32
    %c0_i32_0 = arith.constant 0 : i32
    %c0_i32_1 = arith.constant 0 : i32
    return %c0_i32, %c0_i32_0 : i32, i32
  }
  func.func @transform_3(%arg0: i32) -> (i32, i32) {
    %c0_i32 = arith.constant 0 : i32
    %c0_i32_0 = arith.constant 0 : i32
    %c0_i32_1 = arith.constant 0 : i32
    return %c0_i32, %c0_i32_0 : i32, i32
  }
  func.func @transform_4(%arg0: i32) -> (i32, i32) {
    %c0_i32 = arith.constant 0 : i32
    %c0_i32_0 = arith.constant 0 : i32
    %c0_i32_1 = arith.constant 0 : i32
    return %c0_i32, %c0_i32_0 : i32, i32
  }
  func.func @transform_5(%arg0: i32) -> (i32, i32) {
    %c0_i32 = arith.constant 0 : i32
    %c0_i32_0 = arith.constant 0 : i32
    %c0_i32_1 = arith.constant 0 : i32
    return %c0_i32, %c0_i32_0 : i32, i32
  }
  func.func @transform_6(%arg0: i32) -> (i32, i32) {
    %c0_i32 = arith.constant 0 : i32
    %c0_i32_0 = arith.constant 0 : i32
    return %c0_i32, %arg0 : i32, i32
  }
}

module attributes {stable_mosaic.version = 11 : i64} {
  func.func @mlp_kernel(%arg0: i32, %arg1: memref<32x128xbf16, #tpu.memory_space<vmem>>, %arg2: memref<2x32xf32, #tpu.memory_space<vmem>>, %arg3: memref<32x32xbf16, #tpu.memory_space<vmem>>, %arg4: memref<32x32xbf16, #tpu.memory_space<vmem>>, %arg5: memref<32x32xbf16, #tpu.memory_space<vmem>>, %arg6: memref<129x1xf32, #tpu.memory_space<vmem>>, %arg7: memref<1x128xf32, #tpu.memory_space<vmem>>) attributes {dimension_semantics = [#tpu.dimension_semantics<parallel>], iteration_bounds = array<i64: 1>, scalar_prefetch = 0 : i64, scratch_operands = 0 : i64, tpu.core_type = #tpu.core_type<tc>, window_params = [{transform_indices = @transform_0, window_bounds = array<i64: 32, 128>}, {pipeline_mode = #tpu.pipeline_mode<synchronous>, transform_indices = @transform_1, window_bounds = array<i64: 2, 32>}, {pipeline_mode = #tpu.pipeline_mode<synchronous>, transform_indices = @transform_2, window_bounds = array<i64: 32, 32>}, {pipeline_mode = #tpu.pipeline_mode<synchronous>, transform_indices = @transform_3, window_bounds = array<i64: 32, 32>}, {pipeline_mode = #tpu.pipeline_mode<synchronous>, transform_indices = @transform_4, window_bounds = array<i64: 32, 32>}, {pipeline_mode = #tpu.pipeline_mode<synchronous>, transform_indices = @transform_5, window_bounds = array<i64: 129, 1>}, {transform_indices = @transform_6, window_bounds = array<i64: 1, 128>}]} {
    %c0 = arith.constant 0 : index
    %c0_0 = arith.constant 0 : index
    %0 = vector.load %arg6[%c0, %c0_0] : memref<129x1xf32, #tpu.memory_space<vmem>>, vector<32x1xf32>
    %c32 = arith.constant 32 : index
    %c0_1 = arith.constant 0 : index
    %1 = vector.load %arg6[%c32, %c0_1] : memref<129x1xf32, #tpu.memory_space<vmem>>, vector<32x1xf32>
    %c64 = arith.constant 64 : index
    %c0_2 = arith.constant 0 : index
    %2 = vector.load %arg6[%c64, %c0_2] : memref<129x1xf32, #tpu.memory_space<vmem>>, vector<32x1xf32>
    %c96 = arith.constant 96 : index
    %c0_3 = arith.constant 0 : index
    %3 = vector.load %arg6[%c96, %c0_3] : memref<129x1xf32, #tpu.memory_space<vmem>>, vector<32x1xf32>
    %c128 = arith.constant 128 : index
    %c0_4 = arith.constant 0 : index
    %4 = vector.load %arg6[%c128, %c0_4] : memref<129x1xf32, #tpu.memory_space<vmem>>, vector<1x1xf32>
    %c0_5 = arith.constant 0 : index
    %c0_6 = arith.constant 0 : index
    %5 = vector.load %arg3[%c0_5, %c0_6] : memref<32x32xbf16, #tpu.memory_space<vmem>>, vector<32x32xbf16>
    %c0_7 = arith.constant 0 : index
    %c0_8 = arith.constant 0 : index
    %6 = vector.load %arg1[%c0_7, %c0_8] : memref<32x128xbf16, #tpu.memory_space<vmem>>, vector<32x128xbf16>
    %cst = arith.constant dense<0.000000e+00> : vector<32x128xf32>
    %7 = tpu.matmul %5, %6, %cst {dimension_numbers = #tpu.dot_dimension_numbers<[1], [0], [0], [1], [0, 0, 1, 1], [], []>} : vector<32x32xbf16>, vector<32x128xbf16>, vector<32x128xf32> -> vector<32x128xf32>
    %8 = vector.broadcast %0 : vector<32x1xf32> to vector<32x128xf32>
    %9 = arith.addf %7, %8 : vector<32x128xf32>
    %cst_9 = arith.constant 0.000000e+00 : f32
    %10 = vector.broadcast %cst_9 : f32 to vector<32x128xf32>
    %11 = arith.maximumf %9, %10 : vector<32x128xf32>
    %c0_10 = arith.constant 0 : index
    %c0_11 = arith.constant 0 : index
    %12 = vector.load %arg4[%c0_10, %c0_11] : memref<32x32xbf16, #tpu.memory_space<vmem>>, vector<32x32xbf16>
    %13 = arith.truncf %11 : vector<32x128xf32> to vector<32x128xbf16>
    %cst_12 = arith.constant dense<0.000000e+00> : vector<32x128xf32>
    %14 = tpu.matmul %12, %13, %cst_12 {dimension_numbers = #tpu.dot_dimension_numbers<[1], [0], [0], [1], [0, 0, 1, 1], [], []>} : vector<32x32xbf16>, vector<32x128xbf16>, vector<32x128xf32> -> vector<32x128xf32>
    %15 = vector.broadcast %1 : vector<32x1xf32> to vector<32x128xf32>
    %16 = arith.addf %14, %15 : vector<32x128xf32>
    %cst_13 = arith.constant 0.000000e+00 : f32
    %17 = vector.broadcast %cst_13 : f32 to vector<32x128xf32>
    %18 = arith.maximumf %16, %17 : vector<32x128xf32>
    %c0_14 = arith.constant 0 : index
    %c0_15 = arith.constant 0 : index
    %19 = vector.load %arg5[%c0_14, %c0_15] : memref<32x32xbf16, #tpu.memory_space<vmem>>, vector<32x32xbf16>
    %20 = arith.truncf %18 : vector<32x128xf32> to vector<32x128xbf16>
    %cst_16 = arith.constant dense<0.000000e+00> : vector<32x128xf32>
    %21 = tpu.matmul %19, %20, %cst_16 {dimension_numbers = #tpu.dot_dimension_numbers<[1], [0], [0], [1], [0, 0, 1, 1], [], []>} : vector<32x32xbf16>, vector<32x128xbf16>, vector<32x128xf32> -> vector<32x128xf32>
    %22 = vector.broadcast %2 : vector<32x1xf32> to vector<32x128xf32>
    %23 = arith.addf %21, %22 : vector<32x128xf32>
    %cst_17 = arith.constant 0.000000e+00 : f32
    %24 = vector.broadcast %cst_17 : f32 to vector<32x128xf32>
    %25 = arith.maximumf %23, %24 : vector<32x128xf32>
    %26 = vector.broadcast %3 : vector<32x1xf32> to vector<32x128xf32>
    %27 = arith.mulf %25, %26 : vector<32x128xf32>
    %cst_18 = arith.constant dense<0.000000e+00> : vector<128xf32>
    %28 = vector.multi_reduction <add>, %27, %cst_18 [0] : vector<32x128xf32> to vector<128xf32>
    %29 = vector.shape_cast %28 : vector<128xf32> to vector<1x128xf32>
    %30 = vector.broadcast %4 : vector<1x1xf32> to vector<1x128xf32>
    %31 = arith.addf %29, %30 : vector<1x128xf32>
    %32 = arith.negf %31 : vector<1x128xf32>
    %33 = math.exp %32 : vector<1x128xf32>
    %cst_19 = arith.constant 1.000000e+00 : f32
    %34 = vector.broadcast %cst_19 : f32 to vector<1x128xf32>
    %35 = arith.addf %34, %33 : vector<1x128xf32>
    %36 = arith.divf %34, %35 : vector<1x128xf32>
    %c0_20 = arith.constant 0 : index
    %c0_21 = arith.constant 0 : index
    %37 = vector.load %arg7[%c0_20, %c0_21] : memref<1x128xf32, #tpu.memory_space<vmem>>, vector<1x128xf32>
    tpu.vector_store %arg7[%c0_20, %c0_21], %36 {strides = array<i32>} : memref<1x128xf32, #tpu.memory_space<vmem>>, vector<1x128xf32>,
    return
  }
  func.func @transform_0(%arg0: i32) -> (i32, i32) {
    %c0_i32 = arith.constant 0 : i32
    %c0_i32_0 = arith.constant 0 : i32
    return %c0_i32, %arg0 : i32, i32
  }
  func.func @transform_1(%arg0: i32) -> (i32, i32) {
    %c0_i32 = arith.constant 0 : i32
    %c0_i32_0 = arith.constant 0 : i32
    %c0_i32_1 = arith.constant 0 : i32
    return %c0_i32, %c0_i32_0 : i32, i32
  }
  func.func @transform_2(%arg0: i32) -> (i32, i32) {
    %c0_i32 = arith.constant 0 : i32
    %c0_i32_0 = arith.constant 0 : i32
    %c0_i32_1 = arith.constant 0 : i32
    return %c0_i32, %c0_i32_0 : i32, i32
  }
  func.func @transform_3(%arg0: i32) -> (i32, i32) {
    %c0_i32 = arith.constant 0 : i32
    %c0_i32_0 = arith.constant 0 : i32
    %c0_i32_1 = arith.constant 0 : i32
    return %c0_i32, %c0_i32_0 : i32, i32
  }
  func.func @transform_4(%arg0: i32) -> (i32, i32) {
    %c0_i32 = arith.constant 0 : i32
    %c0_i32_0 = arith.constant 0 : i32
    %c0_i32_1 = arith.constant 0 : i32
    return %c0_i32, %c0_i32_0 : i32, i32
  }
  func.func @transform_5(%arg0: i32) -> (i32, i32) {
    %c0_i32 = arith.constant 0 : i32
    %c0_i32_0 = arith.constant 0 : i32
    %c0_i32_1 = arith.constant 0 : i32
    return %c0_i32, %c0_i32_0 : i32, i32
  }
  func.func @transform_6(%arg0: i32) -> (i32, i32) {
    %c0_i32 = arith.constant 0 : i32
    %c0_i32_0 = arith.constant 0 : i32
    return %c0_i32, %arg0 : i32, i32
  }
}

</mosaic_0001>

<llo_original>
// kernel: tpu_custom_call.1
$region0: #{tpu_custom_call.1}
  #allocation0 [shape = 'u32[]', space=smem, size = 0x4, offset = 0x4, fixed_abs, tag = 'smem constant byte address 0x4 - core index']
  #allocation1 [shape = 'u32[144,128]{1,0:T(1,128)}', space=vmem, size = 0x12000, scoped, tag = 'internal scratch']
  %s0 = inlined_call_operand.vmem [shape: f32[8,32], index: 0, kind: input, shape index: {}]
  %s1 = inlined_call_operand.vmem [shape: f32[2,32], index: 1, kind: input, shape index: {}]
  %s2 = inlined_call_operand.vmem [shape: bf16[32,32], index: 2, kind: input, shape index: {}]
  %s3 = inlined_call_operand.vmem [shape: bf16[32,32], index: 3, kind: input, shape index: {}]
  %s4 = inlined_call_operand.vmem [shape: bf16[32,32], index: 4, kind: input, shape index: {}]
  %s5 = inlined_call_operand.vmem [shape: f32[129,1], index: 5, kind: input, shape index: {}]
  %s6 = inlined_call_operand.hbm [shape: f32[1,128], index: 6, kind: output, shape index: {}]
  %s7 = sld [smem:[#allocation0]]
  $region34: #{tpu_custom_call.1} parent=0
    _
  %s9 = ssub.s32 1, %s7
  %s10 = scalar_select 0, %s9, %s7
  $region1: #{tpu_custom_call.1} parent=0
    #allocation2 [shape = 'u8[512]{0}', space=vmem, size = 0x400, scoped, tag = 'output window, operand 0, single buffered']
    #allocation3 [shape = 's32[1]{0}', space=sflag, size = 0x4, scoped, tag = 'scoped memory for tpu_custom_call.1']
    %11 = vsyncpa [#allocation3], 0
    // Predicated region
    $region2: #{tpu_custom_call.1} parent=1 // pred_check
      _
    $region3: #{tpu_custom_call.1} parent=1 // pred_check_branch
      %13 = sbr.rel (0) target = $region5
    $region4: #{tpu_custom_call.1} parent=1 // pred_region
      _
    $region5: #{tpu_custom_call.1} parent=1 // pred_fallthru
      _
    // Predicated region
    $region6: #{tpu_custom_call.1} parent=1 // pred_check
      _
    $region7: #{tpu_custom_call.1} parent=1 // pred_check_branch
      %15 = sbr.rel (0) target = $region9
    $region8: #{tpu_custom_call.1} parent=1 // pred_region
      _
    $region9: #{tpu_custom_call.1} parent=1 // pred_fallthru
      _
    // Predicated region
    $region10: #{tpu_custom_call.1} parent=1 // pred_check
      _
    $region11: #{tpu_custom_call.1} parent=1 // pred_check_branch
      %17 = sbr.rel (0) target = $region13
    $region12: #{tpu_custom_call.1} parent=1 // pred_region
      _
    $region13: #{tpu_custom_call.1} parent=1 // pred_fallthru
      _
    // Predicated region
    $region14: #{tpu_custom_call.1} parent=1 // pred_check
      _
    $region15: #{tpu_custom_call.1} parent=1 // pred_check_branch
      %19 = sbr.rel (0) target = $region17
    $region16: #{tpu_custom_call.1} parent=1 // pred_region
      _
    $region17: #{tpu_custom_call.1} parent=1 // pred_fallthru
      _
    // Predicated region
    $region18: #{tpu_custom_call.1} parent=1 // pred_check
      _
    $region19: #{tpu_custom_call.1} parent=1 // pred_check_branch
      %21 = sbr.rel (0) target = $region21
    $region20: #{tpu_custom_call.1} parent=1 // pred_region
      _
    $region21: #{tpu_custom_call.1} parent=1 // pred_fallthru
      _
    // Predicated region
    $region22: #{tpu_custom_call.1} parent=1 // pred_check
      _
    $region23: #{tpu_custom_call.1} parent=1 // pred_check_branch
      %23 = sbr.rel (0) target = $region25
    $region24: #{tpu_custom_call.1} parent=1 // pred_region
      _
    $region25: #{tpu_custom_call.1} parent=1 // pred_fallthru
      _
    %v25 = vld [vmem:[%s5] sm:$0xff]
    %v26 = vld [vmem:[%s5 + $0x8] sm:$0xff]
    %v27 = vld [vmem:[%s5 + $0x10] sm:$0xff]
    %v28 = vld [vmem:[%s5 + $0x18] sm:$0xff]
    %v29 = vld [vmem:[%s5 + $0x20] sm:$0xff]
    %v30 = vld [vmem:[%s5 + $0x28] sm:$0xff]
    %v31 = vld [vmem:[%s5 + $0x30] sm:$0xff]
    %v32 = vld [vmem:[%s5 + $0x38] sm:$0xff]
    %v33 = vld [vmem:[%s5 + $0x40] sm:$0xff]
    %v34 = vld [vmem:[%s5 + $0x48] sm:$0xff]
    %v35 = vld [vmem:[%s5 + $0x50] sm:$0xff]
    %v36 = vld [vmem:[%s5 + $0x58] sm:$0xff]
    %v37 = vld [vmem:[%s5 + $0x60] sm:$0xff]
    %v38 = vld [vmem:[%s5 + $0x68] sm:$0xff]
    %v39 = vld [vmem:[%s5 + $0x70] sm:$0xff]
    %v40 = vld [vmem:[%s5 + $0x78] sm:$0xff]
    %v41 = vld [vmem:[%s5 + $0x80] sm:$0x1]
    %v42 = vld [vmem:[%s0] sm:$0xff]
    %v43 = vld [vmem:[%s0 + $0x8] sm:$0xff]
    %v44 = vld [vmem:[%s0 + $0x10] sm:$0xff]
    %v45 = vld [vmem:[%s0 + $0x18] sm:$0xff]
    %v46 = vld [vmem:[%s0 + $0x20] sm:$0xff]
    %v47 = vld [vmem:[%s0 + $0x28] sm:$0xff]
    %v48 = vld [vmem:[%s0 + $0x30] sm:$0xff]
    %v49 = vld [vmem:[%s0 + $0x38] sm:$0xff]
    %v50 = vld [vmem:[%s0 + $0x40] sm:$0xff]
    %v51 = vld [vmem:[%s0 + $0x48] sm:$0xff]
    %v52 = vld [vmem:[%s0 + $0x50] sm:$0xff]
    %v53 = vld [vmem:[%s0 + $0x58] sm:$0xff]
    %v54 = vld [vmem:[%s0 + $0x60] sm:$0xff]
    %v55 = vld [vmem:[%s0 + $0x68] sm:$0xff]
    %v56 = vld [vmem:[%s0 + $0x70] sm:$0xff]
    %v57 = vld [vmem:[%s0 + $0x78] sm:$0xff]
    %v58 = vld [vmem:[%s1] sm:$0x1]
    %v59 = vlaneseq
    %v60 = vshrl.u32 %v59, 7
    %v61 = vsub.s32 0, %v60
    %v62 = vrot.slane %v58, %v61
    %v63 = vmul.f32 %v42, %v62
    %v64 = vmul.f32 %v43, %v62
    %v65 = vmul.f32 %v44, %v62
    %v66 = vmul.f32 %v45, %v62
    %v67 = vmul.f32 %v46, %v62
    %v68 = vmul.f32 %v47, %v62
    %v69 = vmul.f32 %v48, %v62
    %v70 = vmul.f32 %v49, %v62
    %v71 = vmul.f32 %v50, %v62
    %v72 = vmul.f32 %v51, %v62
    %v73 = vmul.f32 %v52, %v62
    %v74 = vmul.f32 %v53, %v62
    %v75 = vmul.f32 %v54, %v62
    %v76 = vmul.f32 %v55, %v62
    %v77 = vmul.f32 %v56, %v62
    %v78 = vmul.f32 %v57, %v62
    %v79 = vld [vmem:[%s1 + $0x1] sm:$0x1]
    %v80 = vlaneseq
    %v81 = vshrl.u32 %v80, 7
    %v82 = vsub.s32 0, %v81
    %v83 = vrot.slane %v79, %v82
    %v84 = vadd.f32 %v63, %v83
    %v85 = vadd.f32 %v64, %v83
    %v86 = vadd.f32 %v65, %v83
    %v87 = vadd.f32 %v66, %v83
    %v88 = vadd.f32 %v67, %v83
    %v89 = vadd.f32 %v68, %v83
    %v90 = vadd.f32 %v69, %v83
    %v91 = vadd.f32 %v70, %v83
    %v92 = vadd.f32 %v71, %v83
    %v93 = vadd.f32 %v72, %v83
    %v94 = vadd.f32 %v73, %v83
    %v95 = vadd.f32 %v74, %v83
    %v96 = vadd.f32 %v75, %v83
    %v97 = vadd.f32 %v76, %v83
    %v98 = vadd.f32 %v77, %v83
    %v99 = vadd.f32 %v78, %v83
    %v100 = vld [vmem:[%s2] sm:$0xf]
    %v101 = vld [vmem:[%s2 + $0x4] sm:$0xf]
    %v102 = vld [vmem:[%s2 + $0x8] sm:$0xf]
    %v103 = vld [vmem:[%s2 + $0xc] sm:$0xf]
    %v104 = vpack.c.bf16 %v85, %v84
    %v105 = vpack.c.bf16 %v87, %v86
    %v106 = vpack.c.bf16 %v89, %v88
    %v107 = vpack.c.bf16 %v91, %v90
    %v108 = vpack.c.bf16 %v93, %v92
    %v109 = vpack.c.bf16 %v95, %v94
    %v110 = vpack.c.bf16 %v97, %v96
    %v111 = vpack.c.bf16 %v99, %v98
    %113 = vset.pattern.permute.xlu0 0
    %114 = vperm.xlu0 %113, %v25
    %v115 = vpop.permute.xlu0 %114
    %118 = vset.pattern.permute.xlu0 0
    %119 = vperm.xlu0 %118, %v26
    %v120 = vpop.permute.xlu0 %119
    %123 = vset.pattern.permute.xlu0 0
    %124 = vperm.xlu0 %123, %v27
    %v125 = vpop.permute.xlu0 %124
    %128 = vset.pattern.permute.xlu0 0
    %129 = vperm.xlu0 %128, %v28
    %v130 = vpop.permute.xlu0 %129
    %v136 = vunpack.c.l.b16 %v100
    %v137 = vunpack.c.l.b16 %v101
    %v138 = vunpack.c.l.b16 %v102
    %v139 = vunpack.c.l.b16 %v103
    %v140 = vpack.c.b16 %v137, %v136
    %v141 = vpack.c.b16 %v139, %v138
    %vm142 = vcmask 261120
    %v144 = vsel %vm142, %v140, 0
    %v147 = vsel %vm142, %v141, 0
    %v150 = vsel %vm142, %v104, 0
    %v153 = vsel %vm142, %v105, 0
    %v156 = vsel %vm142, %v106, 0
    %v159 = vsel %vm142, %v107, 0
    %v162 = vsel %vm142, %v108, 0
    %v165 = vsel %vm142, %v109, 0
    %v168 = vsel %vm142, %v110, 0
    %v171 = vsel %vm142, %v111, 0
    %173 = vmatprep.subr.bf16.mxu0 0
    %174 = vmatpush1.bf16.xpose.msra.mxu0 %v171
    %175 = vmatprep.subr.bf16.mxu0 0
    %176 = vmatpush1.bf16.xpose.msra.mxu0 %v168
    %177 = vmatprep.subr.bf16.mxu0 0
    %178 = vmatpush1.bf16.xpose.msra.mxu0 %v165
    %179 = vmatprep.subr.bf16.mxu0 0
    %180 = vmatpush1.bf16.xpose.msra.mxu0 %v162
    %181 = vmatprep.subr.bf16.mxu0 0
    %182 = vmatpush1.bf16.xpose.msra.mxu0 %v159
    %183 = vmatprep.subr.bf16.mxu0 0
    %184 = vmatpush1.bf16.xpose.msra.mxu0 %v156
    %185 = vmatprep.subr.bf16.mxu0 0
    %186 = vmatpush1.bf16.xpose.msra.mxu0 %v153
    %187 = vmatprep.subr.bf16.mxu0 0
    %188 = vmatpush1.bf16.xpose.msra.mxu0 %v150
    %189 = vmatprep.subr.bf16.mxu0 0
    %190 = vmatpush2.bf16.xpose.msra.mxu0 0
    %191 = vmatprep.subr.bf16.mxu0 0
    %192 = vmatpush2.bf16.xpose.msra.mxu0 0
    %193 = vmatprep.subr.bf16.mxu0 0
    %194 = vmatpush2.bf16.xpose.msra.mxu0 0
    %195 = vmatprep.subr.bf16.mxu0 0
    %196 = vmatpush2.bf16.xpose.msra.mxu0 0
    %197 = vmatprep.subr.bf16.mxu0 0
    %198 = vmatpush2.bf16.xpose.msra.mxu0 0
    %199 = vmatprep.subr.bf16.mxu0 0
    %200 = vmatpush2.bf16.xpose.msra.mxu0 0
    %201 = vmatprep.subr.bf16.mxu0 0
    %202 = vmatpush2.bf16.xpose.msra.mxu0 0
    %203 = vmatprep.subr.bf16.mxu0 0
    %204 = vmatpush2.bf16.xpose.msra.mxu0 0
    %205 = vmatprep.mubr.bf16.mxu0 0
    %206 = vmatmul.mubr.bf16.gmra.mxu0 %v144
    %v207 = vpop.f32.mrf.mxu0
    %v208 = vadd.f32 %v115, %v207
    %v209 = vpop.f32.mrf.mxu0
    %v210 = vpop.f32.mrf.mxu0
    %v211 = vadd.f32 %v120, %v210
    %v212 = vpop.f32.mrf.mxu0
    %213 = vmatprep.mubr.bf16.mxu0 0
    %214 = vmatmul.mubr.bf16.gmra.mxu0 %v147
    %v215 = vpop.f32.mrf.mxu0
    %v216 = vadd.f32 %v125, %v215
    %v217 = vpop.f32.mrf.mxu0
    %v218 = vpop.f32.mrf.mxu0
    %v219 = vadd.f32 %v130, %v218
    %v220 = vpop.f32.mrf.mxu0
    %221 = vdwg.mxu0
    %v222 = vmax.f32 %v208, 0.0
    %v223 = vmax.f32 %v211, 0.0
    %v224 = vmax.f32 %v216, 0.0
    %v225 = vmax.f32 %v219, 0.0
    %v226 = vld [vmem:[%s3] sm:$0xf]
    %v227 = vld [vmem:[%s3 + $0x4] sm:$0xf]
    %v228 = vld [vmem:[%s3 + $0x8] sm:$0xf]
    %v229 = vld [vmem:[%s3 + $0xc] sm:$0xf]
    %v230 = vpack.c.bf16 %v223, %v222
    %v231 = vpack.c.bf16 %v225, %v224
    %233 = vset.pattern.permute.xlu0 0
    %234 = vperm.xlu0 %233, %v29
    %v235 = vpop.permute.xlu0 %234
    %238 = vset.pattern.permute.xlu0 0
    %239 = vperm.xlu0 %238, %v30
    %v240 = vpop.permute.xlu0 %239
    %243 = vset.pattern.permute.xlu0 0
    %244 = vperm.xlu0 %243, %v31
    %v245 = vpop.permute.xlu0 %244
    %248 = vset.pattern.permute.xlu0 0
    %249 = vperm.xlu0 %248, %v32
    %v250 = vpop.permute.xlu0 %249
    %v256 = vunpack.c.l.b16 %v226
    %v257 = vunpack.c.l.b16 %v227
    %v258 = vunpack.c.l.b16 %v228
    %v259 = vunpack.c.l.b16 %v229
    %v260 = vpack.c.b16 %v257, %v256
    %v261 = vpack.c.b16 %v259, %v258
    %v263 = vsel %vm142, %v260, 0
    %v266 = vsel %vm142, %v261, 0
    %268 = vmatprep.subr.bf16.mxu0 0
    %269 = vmatpush1.bf16.msra.mxu0 0
    %270 = vmatprep.subr.bf16.mxu0 0
    %271 = vmatpush1.bf16.msra.mxu0 0
    %272 = vmatprep.subr.bf16.mxu0 0
    %273 = vmatpush1.bf16.msra.mxu0 0
    %274 = vmatprep.subr.bf16.mxu0 0
    %275 = vmatpush1.bf16.msra.mxu0 0
    %276 = vmatprep.subr.bf16.mxu0 0
    %277 = vmatpush1.bf16.msra.mxu0 0
    %278 = vmatprep.subr.bf16.mxu0 0
    %279 = vmatpush1.bf16.msra.mxu0 0
    %280 = vmatprep.subr.bf16.mxu0 0
    %281 = vmatpush1.bf16.msra.mxu0 %v231
    %282 = vmatprep.subr.bf16.mxu0 0
    %283 = vmatpush1.bf16.msra.mxu0 %v230
    %284 = vmatprep.subr.bf16.mxu0 0
    %285 = vmatpush2.bf16.msra.mxu0 0
    %286 = vmatprep.subr.bf16.mxu0 0
    %287 = vmatpush2.bf16.msra.mxu0 0
    %288 = vmatprep.subr.bf16.mxu0 0
    %289 = vmatpush2.bf16.msra.mxu0 0
    %290 = vmatprep.subr.bf16.mxu0 0
    %291 = vmatpush2.bf16.msra.mxu0 0
    %292 = vmatprep.subr.bf16.mxu0 0
    %293 = vmatpush2.bf16.msra.mxu0 0
    %294 = vmatprep.subr.bf16.mxu0 0
    %295 = vmatpush2.bf16.msra.mxu0 0
    %296 = vmatprep.subr.bf16.mxu0 0
    %297 = vmatpush2.bf16.msra.mxu0 0
    %298 = vmatprep.subr.bf16.mxu0 0
    %299 = vmatpush2.bf16.msra.mxu0 0
    %300 = vmatprep.mubr.bf16.mxu0 0
    %301 = vmatmul.mubr.bf16.gmra.mxu0 %v263
    %v302 = vpop.f32.mrf.mxu0
    %v303 = vadd.f32 %v235, %v302
    %v304 = vpop.f32.mrf.mxu0
    %v305 = vpop.f32.mrf.mxu0
    %v306 = vadd.f32 %v240, %v305
    %v307 = vpop.f32.mrf.mxu0
    %308 = vmatprep.mubr.bf16.mxu0 0
    %309 = vmatmul.mubr.bf16.gmra.mxu0 %v266
    %v310 = vpop.f32.mrf.mxu0
    %v311 = vadd.f32 %v245, %v310
    %v312 = vpop.f32.mrf.mxu0
    %v313 = vpop.f32.mrf.mxu0
    %v314 = vadd.f32 %v250, %v313
    %v315 = vpop.f32.mrf.mxu0
    %316 = vdwg.mxu0
    %v317 = vmax.f32 %v303, 0.0
    %v318 = vmax.f32 %v306, 0.0
    %v319 = vmax.f32 %v311, 0.0
    %v320 = vmax.f32 %v314, 0.0
    %v321 = vld [vmem:[%s4] sm:$0xf]
    %v322 = vld [vmem:[%s4 + $0x4] sm:$0xf]
    %v323 = vld [vmem:[%s4 + $0x8] sm:$0xf]
    %v324 = vld [vmem:[%s4 + $0xc] sm:$0xf]
    %v325 = vpack.c.bf16 %v318, %v317
    %v326 = vpack.c.bf16 %v320, %v319
    %328 = vset.pattern.permute.xlu0 0
    %329 = vperm.xlu0 %328, %v33
    %v330 = vpop.permute.xlu0 %329
    %333 = vset.pattern.permute.xlu0 0
    %334 = vperm.xlu0 %333, %v34
    %v335 = vpop.permute.xlu0 %334
    %338 = vset.pattern.permute.xlu0 0
    %339 = vperm.xlu0 %338, %v35
    %v340 = vpop.permute.xlu0 %339
    %343 = vset.pattern.permute.xlu0 0
    %344 = vperm.xlu0 %343, %v36
    %v345 = vpop.permute.xlu0 %344
    %v351 = vunpack.c.l.b16 %v321
    %v352 = vunpack.c.l.b16 %v322
    %v353 = vunpack.c.l.b16 %v323
    %v354 = vunpack.c.l.b16 %v324
    %v355 = vpack.c.b16 %v352, %v351
    %v356 = vpack.c.b16 %v354, %v353
    %v358 = vsel %vm142, %v355, 0
    %v361 = vsel %vm142, %v356, 0
    %363 = vmatprep.subr.bf16.mxu0 0
    %364 = vmatpush1.bf16.msra.mxu0 0
    %365 = vmatprep.subr.bf16.mxu0 0
    %366 = vmatpush1.bf16.msra.mxu0 0
    %367 = vmatprep.subr.bf16.mxu0 0
    %368 = vmatpush1.bf16.msra.mxu0 0
    %369 = vmatprep.subr.bf16.mxu0 0
    %370 = vmatpush1.bf16.msra.mxu0 0
    %371 = vmatprep.subr.bf16.mxu0 0
    %372 = vmatpush1.bf16.msra.mxu0 0
    %373 = vmatprep.subr.bf16.mxu0 0
    %374 = vmatpush1.bf16.msra.mxu0 0
    %375 = vmatprep.subr.bf16.mxu0 0
    %376 = vmatpush1.bf16.msra.mxu0 %v326
    %377 = vmatprep.subr.bf16.mxu0 0
    %378 = vmatpush1.bf16.msra.mxu0 %v325
    %379 = vmatprep.subr.bf16.mxu0 0
    %380 = vmatpush2.bf16.msra.mxu0 0
    %381 = vmatprep.subr.bf16.mxu0 0
    %382 = vmatpush2.bf16.msra.mxu0 0
    %383 = vmatprep.subr.bf16.mxu0 0
    %384 = vmatpush2.bf16.msra.mxu0 0
    %385 = vmatprep.subr.bf16.mxu0 0
    %386 = vmatpush2.bf16.msra.mxu0 0
    %387 = vmatprep.subr.bf16.mxu0 0
    %388 = vmatpush2.bf16.msra.mxu0 0
    %389 = vmatprep.subr.bf16.mxu0 0
    %390 = vmatpush2.bf16.msra.mxu0 0
    %391 = vmatprep.subr.bf16.mxu0 0
    %392 = vmatpush2.bf16.msra.mxu0 0
    %393 = vmatprep.subr.bf16.mxu0 0
    %394 = vmatpush2.bf16.msra.mxu0 0
    %395 = vmatprep.mubr.bf16.mxu0 0
    %396 = vmatmul.mubr.bf16.gmra.mxu0 %v358
    %v397 = vpop.f32.mrf.mxu0
    %v398 = vadd.f32 %v330, %v397
    %v399 = vpop.f32.mrf.mxu0
    %v400 = vpop.f32.mrf.mxu0
    %v401 = vadd.f32 %v335, %v400
    %v402 = vpop.f32.mrf.mxu0
    %403 = vmatprep.mubr.bf16.mxu0 0
    %404 = vmatmul.mubr.bf16.gmra.mxu0 %v361
    %v405 = vpop.f32.mrf.mxu0
    %v406 = vadd.f32 %v340, %v405
    %v407 = vpop.f32.mrf.mxu0
    %v408 = vpop.f32.mrf.mxu0
    %v409 = vadd.f32 %v345, %v408
    %v410 = vpop.f32.mrf.mxu0
    %411 = vdwg.mxu0
    %v412 = vmax.f32 %v398, 0.0
    %v413 = vmax.f32 %v401, 0.0
    %v414 = vmax.f32 %v406, 0.0
    %v415 = vmax.f32 %v409, 0.0
    %417 = vset.pattern.permute.xlu0 0
    %418 = vperm.xlu0 %417, %v37
    %v419 = vpop.permute.xlu0 %418
    %422 = vset.pattern.permute.xlu0 0
    %423 = vperm.xlu0 %422, %v38
    %v424 = vpop.permute.xlu0 %423
    %427 = vset.pattern.permute.xlu0 0
    %428 = vperm.xlu0 %427, %v39
    %v429 = vpop.permute.xlu0 %428
    %432 = vset.pattern.permute.xlu0 0
    %433 = vperm.xlu0 %432, %v40
    %v434 = vpop.permute.xlu0 %433
    %v436 = vmul.f32 %v412, %v419
    %v437 = vmul.f32 %v413, %v424
    %v438 = vmul.f32 %v414, %v429
    %v439 = vmul.f32 %v415, %v434
    %v440 = vadd.f32 %v436, %v437
    %v441 = vadd.f32 %v440, %v438
    %v442 = vadd.f32 %v441, %v439
    %v443 = vrot.slane %v442, 4
    %v444 = vadd.f32 %v442, %v443
    %v445 = vrot.slane %v444, 2
    %v446 = vadd.f32 %v444, %v445
    %v447 = vrot.slane %v446, 1
    %v448 = vadd.f32 %v446, %v447
    %450 = vset.pattern.permute.xlu0 0
    %451 = vperm.xlu0 %450, %v41
    %v452 = vpop.permute.xlu0 %451
    %v454 = vadd.f32 %v448, %v452
    %v455 = vxor.u32 %v454, 2147483648
    %v456 = vmul.f32 %v455, 1.442695
    %v457 = vpow.pop %v456
    %v458 = vadd.f32 %v457, 1.0
    %v459 = vrcp.pop %v458
    %v460 = vmul.f32 1.0, %v459
    %461 = vst [vmem:[#allocation2] sm:$0x1] %v460
    // Predicated region
    $region26: #{tpu_custom_call.1} parent=1 // pred_check
      _
    $region27: #{tpu_custom_call.1} parent=1 // pred_check_branch
      %463 = sbr.rel (0) target = $region29
    $region28: #{tpu_custom_call.1} parent=1 // pred_region
      %s465 = ssub.s32 16, 16
      %466 = vsyncadd [#allocation3], %s465
      %s468 = sshll.u32 [#allocation2], 4
      %s469 = int_to_ptr.vmem [resolvable:$true] %s468
      %471 = dma.vmem_to_hbm [thread:$0]  %s469, 16, %s6, [#allocation3]
    $region29: #{tpu_custom_call.1} parent=1 // pred_fallthru
      _
    // Predicated region
    $region30: #{tpu_custom_call.1} parent=1 // pred_check
      _
    $region31: #{tpu_custom_call.1} parent=1 // pred_check_branch
      %473 = sbr.rel (0) target = $region33
    $region32: #{tpu_custom_call.1} parent=1 // pred_region
      %474 = dma.done [#allocation3], 16
    $region33: #{tpu_custom_call.1} parent=1 // pred_fallthru
      _
    %475 = vsyncpa [#allocation3], 1

// kernel: tpu_custom_call.1
$region0: #{tpu_custom_call.1}
  #allocation0 [shape = 'u32[]', space=smem, size = 0x4, offset = 0x4, fixed_abs, tag = 'smem constant byte address 0x4 - core index']
  #allocation1 [shape = 'u32[144,128]{1,0:T(1,128)}', space=vmem, size = 0x12000, scoped, tag = 'internal scratch']
  %s0 = inlined_call_operand.vmem [shape: bf16[32,128], index: 0, kind: input, shape index: {}]
  %s1 = inlined_call_operand.vmem [shape: f32[2,32], index: 1, kind: input, shape index: {}]
  %s2 = inlined_call_operand.vmem [shape: bf16[32,32], index: 2, kind: input, shape index: {}]
  %s3 = inlined_call_operand.vmem [shape: bf16[32,32], index: 3, kind: input, shape index: {}]
  %s4 = inlined_call_operand.vmem [shape: bf16[32,32], index: 4, kind: input, shape index: {}]
  %s5 = inlined_call_operand.vmem [shape: f32[129,1], index: 5, kind: input, shape index: {}]
  %s6 = inlined_call_operand.hbm [shape: f32[1,128], index: 6, kind: output, shape index: {}]
  %s7 = sld [smem:[#allocation0]]
  $region34: #{tpu_custom_call.1} parent=0
    _
  %s9 = ssub.s32 1, %s7
  %s10 = scalar_select 0, %s9, %s7
  $region1: #{tpu_custom_call.1} parent=0
    #allocation2 [shape = 'u8[512]{0}', space=vmem, size = 0x400, scoped, tag = 'output window, operand 0, single buffered']
    #allocation3 [shape = 's32[1]{0}', space=sflag, size = 0x4, scoped, tag = 'scoped memory for tpu_custom_call.1']
    %11 = vsyncpa [#allocation3], 0
    // Predicated region
    $region2: #{tpu_custom_call.1} parent=1 // pred_check
      _
    $region3: #{tpu_custom_call.1} parent=1 // pred_check_branch
      %13 = sbr.rel (0) target = $region5
    $region4: #{tpu_custom_call.1} parent=1 // pred_region
      _
    $region5: #{tpu_custom_call.1} parent=1 // pred_fallthru
      _
    // Predicated region
    $region6: #{tpu_custom_call.1} parent=1 // pred_check
      _
    $region7: #{tpu_custom_call.1} parent=1 // pred_check_branch
      %15 = sbr.rel (0) target = $region9
    $region8: #{tpu_custom_call.1} parent=1 // pred_region
      _
    $region9: #{tpu_custom_call.1} parent=1 // pred_fallthru
      _
    // Predicated region
    $region10: #{tpu_custom_call.1} parent=1 // pred_check
      _
    $region11: #{tpu_custom_call.1} parent=1 // pred_check_branch
      %17 = sbr.rel (0) target = $region13
    $region12: #{tpu_custom_call.1} parent=1 // pred_region
      _
    $region13: #{tpu_custom_call.1} parent=1 // pred_fallthru
      _
    // Predicated region
    $region14: #{tpu_custom_call.1} parent=1 // pred_check
      _
    $region15: #{tpu_custom_call.1} parent=1 // pred_check_branch
      %19 = sbr.rel (0) target = $region17
    $region16: #{tpu_custom_call.1} parent=1 // pred_region
      _
    $region17: #{tpu_custom_call.1} parent=1 // pred_fallthru
      _
    // Predicated region
    $region18: #{tpu_custom_call.1} parent=1 // pred_check
      _
    $region19: #{tpu_custom_call.1} parent=1 // pred_check_branch
      %21 = sbr.rel (0) target = $region21
    $region20: #{tpu_custom_call.1} parent=1 // pred_region
      _
    $region21: #{tpu_custom_call.1} parent=1 // pred_fallthru
      _
    // Predicated region
    $region22: #{tpu_custom_call.1} parent=1 // pred_check
      _
    $region23: #{tpu_custom_call.1} parent=1 // pred_check_branch
      %23 = sbr.rel (0) target = $region25
    $region24: #{tpu_custom_call.1} parent=1 // pred_region
      _
    $region25: #{tpu_custom_call.1} parent=1 // pred_fallthru
      _
    %v25 = vld [vmem:[%s5] sm:$0xff]
    %v26 = vld [vmem:[%s5 + $0x8] sm:$0xff]
    %v27 = vld [vmem:[%s5 + $0x10] sm:$0xff]
    %v28 = vld [vmem:[%s5 + $0x18] sm:$0xff]
    %v29 = vld [vmem:[%s5 + $0x20] sm:$0xff]
    %v30 = vld [vmem:[%s5 + $0x28] sm:$0xff]
    %v31 = vld [vmem:[%s5 + $0x30] sm:$0xff]
    %v32 = vld [vmem:[%s5 + $0x38] sm:$0xff]
    %v33 = vld [vmem:[%s5 + $0x40] sm:$0xff]
    %v34 = vld [vmem:[%s5 + $0x48] sm:$0xff]
    %v35 = vld [vmem:[%s5 + $0x50] sm:$0xff]
    %v36 = vld [vmem:[%s5 + $0x58] sm:$0xff]
    %v37 = vld [vmem:[%s5 + $0x60] sm:$0xff]
    %v38 = vld [vmem:[%s5 + $0x68] sm:$0xff]
    %v39 = vld [vmem:[%s5 + $0x70] sm:$0xff]
    %v40 = vld [vmem:[%s5 + $0x78] sm:$0xff]
    %v41 = vld [vmem:[%s5 + $0x80] sm:$0x1]
    %v42 = vld [vmem:[%s2] sm:$0xf]
    %v43 = vld [vmem:[%s2 + $0x4] sm:$0xf]
    %v44 = vld [vmem:[%s2 + $0x8] sm:$0xf]
    %v45 = vld [vmem:[%s2 + $0xc] sm:$0xf]
    %v46 = vld [vmem:[%s0] sm:$0xf]
    %v47 = vld [vmem:[%s0 + $0x4] sm:$0xf]
    %v48 = vld [vmem:[%s0 + $0x8] sm:$0xf]
    %v49 = vld [vmem:[%s0 + $0xc] sm:$0xf]
    %51 = vset.pattern.permute.xlu0 0
    %52 = vperm.xlu0 %51, %v25
    %v53 = vpop.permute.xlu0 %52
    %56 = vset.pattern.permute.xlu0 0
    %57 = vperm.xlu0 %56, %v26
    %v58 = vpop.permute.xlu0 %57
    %61 = vset.pattern.permute.xlu0 0
    %62 = vperm.xlu0 %61, %v27
    %v63 = vpop.permute.xlu0 %62
    %66 = vset.pattern.permute.xlu0 0
    %67 = vperm.xlu0 %66, %v28
    %v68 = vpop.permute.xlu0 %67
    %v74 = vunpack.c.l.b16 %v42
    %v75 = vunpack.c.l.b16 %v43
    %v76 = vunpack.c.l.b16 %v44
    %v77 = vunpack.c.l.b16 %v45
    %v78 = vpack.c.b16 %v75, %v74
    %v79 = vpack.c.b16 %v77, %v76
    %v84 = vunpack.c.l.b16 %v46
    %v85 = vunpack.c.l.b16 %v47
    %v86 = vunpack.c.l.b16 %v48
    %v87 = vunpack.c.l.b16 %v49
    %v88 = vpack.c.b16 %v85, %v84
    %v89 = vpack.c.b16 %v87, %v86
    %vm92 = vcmask 261120
    %v94 = vsel %vm92, %v78, 0
    %v97 = vsel %vm92, %v79, 0
    %99 = vmatprep.subr.bf16.mxu0 0
    %100 = vmatpush1.bf16.msra.mxu0 0
    %101 = vmatprep.subr.bf16.mxu0 0
    %102 = vmatpush1.bf16.msra.mxu0 0
    %103 = vmatprep.subr.bf16.mxu0 0
    %104 = vmatpush1.bf16.msra.mxu0 0
    %105 = vmatprep.subr.bf16.mxu0 0
    %106 = vmatpush1.bf16.msra.mxu0 0
    %107 = vmatprep.subr.bf16.mxu0 0
    %108 = vmatpush1.bf16.msra.mxu0 0
    %109 = vmatprep.subr.bf16.mxu0 0
    %110 = vmatpush1.bf16.msra.mxu0 0
    %111 = vmatprep.subr.bf16.mxu0 0
    %112 = vmatpush1.bf16.msra.mxu0 %v89
    %113 = vmatprep.subr.bf16.mxu0 0
    %114 = vmatpush1.bf16.msra.mxu0 %v88
    %115 = vmatprep.subr.bf16.mxu0 0
    %116 = vmatpush2.bf16.msra.mxu0 0
    %117 = vmatprep.subr.bf16.mxu0 0
    %118 = vmatpush2.bf16.msra.mxu0 0
    %119 = vmatprep.subr.bf16.mxu0 0
    %120 = vmatpush2.bf16.msra.mxu0 0
    %121 = vmatprep.subr.bf16.mxu0 0
    %122 = vmatpush2.bf16.msra.mxu0 0
    %123 = vmatprep.subr.bf16.mxu0 0
    %124 = vmatpush2.bf16.msra.mxu0 0
    %125 = vmatprep.subr.bf16.mxu0 0
    %126 = vmatpush2.bf16.msra.mxu0 0
    %127 = vmatprep.subr.bf16.mxu0 0
    %128 = vmatpush2.bf16.msra.mxu0 0
    %129 = vmatprep.subr.bf16.mxu0 0
    %130 = vmatpush2.bf16.msra.mxu0 0
    %131 = vmatprep.mubr.bf16.mxu0 0
    %132 = vmatmul.mubr.bf16.gmra.mxu0 %v94
    %v133 = vpop.f32.mrf.mxu0
    %v134 = vadd.f32 %v53, %v133
    %v135 = vpop.f32.mrf.mxu0
    %v136 = vpop.f32.mrf.mxu0
    %v137 = vadd.f32 %v58, %v136
    %v138 = vpop.f32.mrf.mxu0
    %139 = vmatprep.mubr.bf16.mxu0 0
    %140 = vmatmul.mubr.bf16.gmra.mxu0 %v97
    %v141 = vpop.f32.mrf.mxu0
    %v142 = vadd.f32 %v63, %v141
    %v143 = vpop.f32.mrf.mxu0
    %v144 = vpop.f32.mrf.mxu0
    %v145 = vadd.f32 %v68, %v144
    %v146 = vpop.f32.mrf.mxu0
    %147 = vdwg.mxu0
    %v148 = vmax.f32 %v134, 0.0
    %v149 = vmax.f32 %v137, 0.0
    %v150 = vmax.f32 %v142, 0.0
    %v151 = vmax.f32 %v145, 0.0
    %v152 = vld [vmem:[%s3] sm:$0xf]
    %v153 = vld [vmem:[%s3 + $0x4] sm:$0xf]
    %v154 = vld [vmem:[%s3 + $0x8] sm:$0xf]
    %v155 = vld [vmem:[%s3 + $0xc] sm:$0xf]
    %v156 = vpack.c.bf16 %v149, %v148
    %v157 = vpack.c.bf16 %v151, %v150
    %159 = vset.pattern.permute.xlu0 0
    %160 = vperm.xlu0 %159, %v29
    %v161 = vpop.permute.xlu0 %160
    %164 = vset.pattern.permute.xlu0 0
    %165 = vperm.xlu0 %164, %v30
    %v166 = vpop.permute.xlu0 %165
    %169 = vset.pattern.permute.xlu0 0
    %170 = vperm.xlu0 %169, %v31
    %v171 = vpop.permute.xlu0 %170
    %174 = vset.pattern.permute.xlu0 0
    %175 = vperm.xlu0 %174, %v32
    %v176 = vpop.permute.xlu0 %175
    %v182 = vunpack.c.l.b16 %v152
    %v183 = vunpack.c.l.b16 %v153
    %v184 = vunpack.c.l.b16 %v154
    %v185 = vunpack.c.l.b16 %v155
    %v186 = vpack.c.b16 %v183, %v182
    %v187 = vpack.c.b16 %v185, %v184
    %v189 = vsel %vm92, %v186, 0
    %v192 = vsel %vm92, %v187, 0
    %194 = vmatprep.subr.bf16.mxu0 0
    %195 = vmatpush1.bf16.msra.mxu0 0
    %196 = vmatprep.subr.bf16.mxu0 0
    %197 = vmatpush1.bf16.msra.mxu0 0
    %198 = vmatprep.subr.bf16.mxu0 0
    %199 = vmatpush1.bf16.msra.mxu0 0
    %200 = vmatprep.subr.bf16.mxu0 0
    %201 = vmatpush1.bf16.msra.mxu0 0
    %202 = vmatprep.subr.bf16.mxu0 0
    %203 = vmatpush1.bf16.msra.mxu0 0
    %204 = vmatprep.subr.bf16.mxu0 0
    %205 = vmatpush1.bf16.msra.mxu0 0
    %206 = vmatprep.subr.bf16.mxu0 0
    %207 = vmatpush1.bf16.msra.mxu0 %v157
    %208 = vmatprep.subr.bf16.mxu0 0
    %209 = vmatpush1.bf16.msra.mxu0 %v156
    %210 = vmatprep.subr.bf16.mxu0 0
    %211 = vmatpush2.bf16.msra.mxu0 0
    %212 = vmatprep.subr.bf16.mxu0 0
    %213 = vmatpush2.bf16.msra.mxu0 0
    %214 = vmatprep.subr.bf16.mxu0 0
    %215 = vmatpush2.bf16.msra.mxu0 0
    %216 = vmatprep.subr.bf16.mxu0 0
    %217 = vmatpush2.bf16.msra.mxu0 0
    %218 = vmatprep.subr.bf16.mxu0 0
    %219 = vmatpush2.bf16.msra.mxu0 0
    %220 = vmatprep.subr.bf16.mxu0 0
    %221 = vmatpush2.bf16.msra.mxu0 0
    %222 = vmatprep.subr.bf16.mxu0 0
    %223 = vmatpush2.bf16.msra.mxu0 0
    %224 = vmatprep.subr.bf16.mxu0 0
    %225 = vmatpush2.bf16.msra.mxu0 0
    %226 = vmatprep.mubr.bf16.mxu0 0
    %227 = vmatmul.mubr.bf16.gmra.mxu0 %v189
    %v228 = vpop.f32.mrf.mxu0
    %v229 = vadd.f32 %v161, %v228
    %v230 = vpop.f32.mrf.mxu0
    %v231 = vpop.f32.mrf.mxu0
    %v232 = vadd.f32 %v166, %v231
    %v233 = vpop.f32.mrf.mxu0
    %234 = vmatprep.mubr.bf16.mxu0 0
    %235 = vmatmul.mubr.bf16.gmra.mxu0 %v192
    %v236 = vpop.f32.mrf.mxu0
    %v237 = vadd.f32 %v171, %v236
    %v238 = vpop.f32.mrf.mxu0
    %v239 = vpop.f32.mrf.mxu0
    %v240 = vadd.f32 %v176, %v239
    %v241 = vpop.f32.mrf.mxu0
    %242 = vdwg.mxu0
    %v243 = vmax.f32 %v229, 0.0
    %v244 = vmax.f32 %v232, 0.0
    %v245 = vmax.f32 %v237, 0.0
    %v246 = vmax.f32 %v240, 0.0
    %v247 = vld [vmem:[%s4] sm:$0xf]
    %v248 = vld [vmem:[%s4 + $0x4] sm:$0xf]
    %v249 = vld [vmem:[%s4 + $0x8] sm:$0xf]
    %v250 = vld [vmem:[%s4 + $0xc] sm:$0xf]
    %v251 = vpack.c.bf16 %v244, %v243
    %v252 = vpack.c.bf16 %v246, %v245
    %254 = vset.pattern.permute.xlu0 0
    %255 = vperm.xlu0 %254, %v33
    %v256 = vpop.permute.xlu0 %255
    %259 = vset.pattern.permute.xlu0 0
    %260 = vperm.xlu0 %259, %v34
    %v261 = vpop.permute.xlu0 %260
    %264 = vset.pattern.permute.xlu0 0
    %265 = vperm.xlu0 %264, %v35
    %v266 = vpop.permute.xlu0 %265
    %269 = vset.pattern.permute.xlu0 0
    %270 = vperm.xlu0 %269, %v36
    %v271 = vpop.permute.xlu0 %270
    %v277 = vunpack.c.l.b16 %v247
    %v278 = vunpack.c.l.b16 %v248
    %v279 = vunpack.c.l.b16 %v249
    %v280 = vunpack.c.l.b16 %v250
    %v281 = vpack.c.b16 %v278, %v277
    %v282 = vpack.c.b16 %v280, %v279
    %v284 = vsel %vm92, %v281, 0
    %v287 = vsel %vm92, %v282, 0
    %289 = vmatprep.subr.bf16.mxu0 0
    %290 = vmatpush1.bf16.msra.mxu0 0
    %291 = vmatprep.subr.bf16.mxu0 0
    %292 = vmatpush1.bf16.msra.mxu0 0
    %293 = vmatprep.subr.bf16.mxu0 0
    %294 = vmatpush1.bf16.msra.mxu0 0
    %295 = vmatprep.subr.bf16.mxu0 0
    %296 = vmatpush1.bf16.msra.mxu0 0
    %297 = vmatprep.subr.bf16.mxu0 0
    %298 = vmatpush1.bf16.msra.mxu0 0
    %299 = vmatprep.subr.bf16.mxu0 0
    %300 = vmatpush1.bf16.msra.mxu0 0
    %301 = vmatprep.subr.bf16.mxu0 0
    %302 = vmatpush1.bf16.msra.mxu0 %v252
    %303 = vmatprep.subr.bf16.mxu0 0
    %304 = vmatpush1.bf16.msra.mxu0 %v251
    %305 = vmatprep.subr.bf16.mxu0 0
    %306 = vmatpush2.bf16.msra.mxu0 0
    %307 = vmatprep.subr.bf16.mxu0 0
    %308 = vmatpush2.bf16.msra.mxu0 0
    %309 = vmatprep.subr.bf16.mxu0 0
    %310 = vmatpush2.bf16.msra.mxu0 0
    %311 = vmatprep.subr.bf16.mxu0 0
    %312 = vmatpush2.bf16.msra.mxu0 0
    %313 = vmatprep.subr.bf16.mxu0 0
    %314 = vmatpush2.bf16.msra.mxu0 0
    %315 = vmatprep.subr.bf16.mxu0 0
    %316 = vmatpush2.bf16.msra.mxu0 0
    %317 = vmatprep.subr.bf16.mxu0 0
    %318 = vmatpush2.bf16.msra.mxu0 0
    %319 = vmatprep.subr.bf16.mxu0 0
    %320 = vmatpush2.bf16.msra.mxu0 0
    %321 = vmatprep.mubr.bf16.mxu0 0
    %322 = vmatmul.mubr.bf16.gmra.mxu0 %v284
    %v323 = vpop.f32.mrf.mxu0
    %v324 = vadd.f32 %v256, %v323
    %v325 = vpop.f32.mrf.mxu0
    %v326 = vpop.f32.mrf.mxu0
    %v327 = vadd.f32 %v261, %v326
    %v328 = vpop.f32.mrf.mxu0
    %329 = vmatprep.mubr.bf16.mxu0 0
    %330 = vmatmul.mubr.bf16.gmra.mxu0 %v287
    %v331 = vpop.f32.mrf.mxu0
    %v332 = vadd.f32 %v266, %v331
    %v333 = vpop.f32.mrf.mxu0
    %v334 = vpop.f32.mrf.mxu0
    %v335 = vadd.f32 %v271, %v334
    %v336 = vpop.f32.mrf.mxu0
    %337 = vdwg.mxu0
    %v338 = vmax.f32 %v324, 0.0
    %v339 = vmax.f32 %v327, 0.0
    %v340 = vmax.f32 %v332, 0.0
    %v341 = vmax.f32 %v335, 0.0
    %343 = vset.pattern.permute.xlu0 0
    %344 = vperm.xlu0 %343, %v37
    %v345 = vpop.permute.xlu0 %344
    %348 = vset.pattern.permute.xlu0 0
    %349 = vperm.xlu0 %348, %v38
    %v350 = vpop.permute.xlu0 %349
    %353 = vset.pattern.permute.xlu0 0
    %354 = vperm.xlu0 %353, %v39
    %v355 = vpop.permute.xlu0 %354
    %358 = vset.pattern.permute.xlu0 0
    %359 = vperm.xlu0 %358, %v40
    %v360 = vpop.permute.xlu0 %359
    %v362 = vmul.f32 %v338, %v345
    %v363 = vmul.f32 %v339, %v350
    %v364 = vmul.f32 %v340, %v355
    %v365 = vmul.f32 %v341, %v360
    %v366 = vadd.f32 %v362, %v363
    %v367 = vadd.f32 %v366, %v364
    %v368 = vadd.f32 %v367, %v365
    %v369 = vrot.slane %v368, 4
    %v370 = vadd.f32 %v368, %v369
    %v371 = vrot.slane %v370, 2
    %v372 = vadd.f32 %v370, %v371
    %v373 = vrot.slane %v372, 1
    %v374 = vadd.f32 %v372, %v373
    %376 = vset.pattern.permute.xlu0 0
    %377 = vperm.xlu0 %376, %v41
    %v378 = vpop.permute.xlu0 %377
    %v380 = vadd.f32 %v374, %v378
    %v381 = vxor.u32 %v380, 2147483648
    %v382 = vmul.f32 %v381, 1.442695
    %v383 = vpow.pop %v382
    %v384 = vadd.f32 %v383, 1.0
    %v385 = vrcp.pop %v384
    %v386 = vmul.f32 1.0, %v385
    %387 = vst [vmem:[#allocation2] sm:$0x1] %v386
    // Predicated region
    $region26: #{tpu_custom_call.1} parent=1 // pred_check
      _
    $region27: #{tpu_custom_call.1} parent=1 // pred_check_branch
      %389 = sbr.rel (0) target = $region29
    $region28: #{tpu_custom_call.1} parent=1 // pred_region
      %s391 = ssub.s32 16, 16
      %392 = vsyncadd [#allocation3], %s391
      %s394 = sshll.u32 [#allocation2], 4
      %s395 = int_to_ptr.vmem [resolvable:$true] %s394
      %397 = dma.vmem_to_hbm [thread:$0]  %s395, 16, %s6, [#allocation3]
    $region29: #{tpu_custom_call.1} parent=1 // pred_fallthru
      _
    // Predicated region
    $region30: #{tpu_custom_call.1} parent=1 // pred_check
      _
    $region31: #{tpu_custom_call.1} parent=1 // pred_check_branch
      %399 = sbr.rel (0) target = $region33
    $region32: #{tpu_custom_call.1} parent=1 // pred_region
      %400 = dma.done [#allocation3], 16
    $region33: #{tpu_custom_call.1} parent=1 // pred_fallthru
      _
    %401 = vsyncpa [#allocation3], 1

</llo_original>
